<compile_context>
chip_gen: v6e
topology: v6e:2x2x1
jax: 0.10.0
libtpu: 0.0.40
codegen_flags: <defaults>
</compile_context>

<pallas_src>
import jax
import jax.numpy as jnp
from jax.experimental import pallas as pl
from jax.experimental.pallas import tpu as pltpu

LANE = 128      # TPU lane width (last dim)
SUBLANE = 8     # TPU sublane width (second-to-last dim, f32)
TB_MAX = 1024   # max batch tile (mem-bound f32 sweet spot, amortizes step overhead)
MIN_TILES = 4   # aim for >=4 batch tiles so v7x's 2 TCs both get work


def _round_up(n, m):
    return ((n + m - 1) // m) * m


def simec_kernel(x_ref, w1_ref, b1_ref, w2_ref, b2_ref, wll_ref, out_ref):
    # Cast x tile to bf16 in-kernel (rides free VPU slots, halves nothing in HBM
    # since x is read as f32 exactly once).
    x = x_ref[...].astype(jnp.bfloat16)
    # Layer 1: Dense(in -> hidden, tanh). bf16 operands, f32 accumulate.
    h1 = jnp.tanh(
        jnp.dot(x, w1_ref[...], preferred_element_type=jnp.float32) + b1_ref[...]
    )
    # Layer 2: Dense(hidden -> embedding_dim, tanh).
    h2 = jnp.tanh(
        jnp.dot(h1.astype(jnp.bfloat16), w2_ref[...],
                preferred_element_type=jnp.float32) + b2_ref[...]
    )
    # W_ll: Dense(embedding_dim -> out_dim, bias=False, activation=None).
    # Direct narrow f32 store (block last dim == full array dim).
    out_ref[...] = jnp.dot(
        h2.astype(jnp.bfloat16), wll_ref[...],
        preferred_element_type=jnp.float32,
    ).astype(out_ref.dtype)


def prepare_params(w1, b1, w2, b2, w_ll):
    """One-time (model-init) prep: pad hidden/embedding dims to 128 lanes and
    cast matmul weights to bf16. Biases stay f32. Output dim of W_ll is NOT
    padded so the kernel can write (tb, out_dim) f32 directly."""
    in_dim, hid = w1.shape
    emb = w2.shape[1]
    out_dim = w_ll.shape[1]
    hid_p = _round_up(hid, LANE)
    emb_p = _round_up(emb, LANE)

    bf = jnp.bfloat16
    w1_p = jnp.zeros((in_dim, hid_p), bf).at[:, :hid].set(w1.astype(bf))
    b1_p = jnp.zeros((1, hid_p), jnp.float32).at[:, :hid].set(
        jnp.asarray(b1, jnp.float32).reshape(1, -1))
    w2_p = jnp.zeros((hid_p, emb_p), bf).at[:hid, :emb].set(w2.astype(bf))
    b2_p = jnp.zeros((1, emb_p), jnp.float32).at[:, :emb].set(
        jnp.asarray(b2, jnp.float32).reshape(1, -1))
    wll_p = jnp.zeros((emb_p, out_dim), bf).at[:emb, :].set(w_ll.astype(bf))
    return w1_p, b1_p, w2_p, b2_p, wll_p


def simec_forward(x, prepared):
    """Fused SimEc forward. x: (batch, in_dim) f32 (unpadded, streamed)."""
    w1_p, b1_p, w2_p, b2_p, wll_p = prepared
    batch, in_dim = x.shape
    hid_p = w1_p.shape[1]
    emb_p = w2_p.shape[1]
    out_dim = wll_p.shape[1]

    # Batch tile: as large as possible, but keep >= MIN_TILES tiles so the
    # "parallel" grid axis can be split across v7x's two TensorCores.
    tb = min(TB_MAX, _round_up(pl.cdiv(batch, MIN_TILES), SUBLANE))
    grid = (pl.cdiv(batch, tb),)   # partial tail block is masked on write

    cost = pl.CostEstimate(
        flops=2 * batch * (in_dim * hid_p + hid_p * emb_p + emb_p * out_dim),
        transcendentals=batch * (hid_p + emb_p),
        bytes_accessed=(
            batch * in_dim * 4                      # x read (f32, unpadded)
            + w1_p.size * 2 + w2_p.size * 2 + wll_p.size * 2
            + b1_p.size * 4 + b2_p.size * 4
            + batch * out_dim * 4                   # out write (f32, unpadded)
        ),
    )

    return pl.pallas_call(
        simec_kernel,
        out_shape=jax.ShapeDtypeStruct((batch, out_dim), jnp.float32),
        grid=grid,
        in_specs=[
            pl.BlockSpec((tb, in_dim), lambda i: (i, 0)),     # x: batch-tiled, unpadded
            pl.BlockSpec((in_dim, hid_p), lambda i: (0, 0)),  # W1: resident
            pl.BlockSpec((1, hid_p), lambda i: (0, 0)),       # b1: resident
            pl.BlockSpec((hid_p, emb_p), lambda i: (0, 0)),   # W2: resident
            pl.BlockSpec((1, emb_p), lambda i: (0, 0)),       # b2: resident
            pl.BlockSpec((emb_p, out_dim), lambda i: (0, 0)), # W_ll: resident
        ],
        out_specs=pl.BlockSpec((tb, out_dim), lambda i: (i, 0)),
        compiler_params=pltpu.CompilerParams(
            dimension_semantics=("parallel",),
        ),
        cost_estimate=cost,
    )(x, w1_p, b1_p, w2_p, b2_p, wll_p)


def init_linear(key, in_dim, out_dim, bias=True):
    """PyTorch nn.Linear-style init: U(-1/sqrt(in), 1/sqrt(in)).
    Weight returned in (in_dim, out_dim) layout (transpose of PyTorch's)."""
    kw, kb = jax.random.split(key)
    bound = 1.0 / jnp.sqrt(jnp.float32(in_dim))
    w = jax.random.uniform(kw, (in_dim, out_dim), jnp.float32, -bound, bound)
    if bias:
        b = jax.random.uniform(kb, (1, out_dim), jnp.float32, -bound, bound)
        return w, b
    return w, None


if __name__ == "__main__":
    # Small shapes consistent with the module's forward.
    batch = 8
    in_dim = 32
    hidden = 64
    embedding_dim = 16
    out_dim = 32

    root = jax.random.PRNGKey(0)
    k_x, k_l1, k_l2, k_ll = jax.random.split(root, 4)

    x = jax.random.normal(k_x, (batch, in_dim), jnp.float32)

    # embedding_net = FFNet: Dense(in, hidden, tanh) -> Dense(hidden, emb, tanh)
    w1, b1 = init_linear(k_l1, in_dim, hidden, bias=True)
    w2, b2 = init_linear(k_l2, hidden, embedding_dim, bias=True)
    # W_ll = Dense(embedding_dim, out_dim, bias=False, activation=None)
    w_ll, _ = init_linear(k_ll, embedding_dim, out_dim, bias=False)

    # One-time parameter prep (pad + bf16 cast), hoisted out of the forward.
    prepared = jax.block_until_ready(prepare_params(w1, b1, w2, b2, w_ll))

    out = simec_forward(x, prepared)
    out = jax.block_until_ready(out)

    # Pure-JAX f32 reference of the same forward semantics
    # (kernel uses bf16 MXU operands with f32 accumulation -> loose tolerance).
    # TODO(synk): offer an f32-operand variant if downstream similarity-loss
    # training is sensitive to bf16 rounding in the final bias-free layer.
    h1 = jnp.tanh(x @ w1 + b1)
    h2 = jnp.tanh(h1 @ w2 + b2)
    ref = h2 @ w_ll
    assert out.shape == (batch, out_dim)
    assert jnp.allclose(out, ref, atol=2e-2, rtol=2e-2), (
        float(jnp.max(jnp.abs(out - ref)))
    )

    print("KERNEL_OK")
</pallas_src>

<mosaic_0001>
module attributes {stable_mosaic.version = 11 : i64} {
  func.func @simec_kernel(%arg0: i32, %arg1: memref<8x32xf32, #tpu.memory_space<vmem>>, %arg2: memref<32x128xbf16, #tpu.memory_space<vmem>>, %arg3: memref<1x128xf32, #tpu.memory_space<vmem>>, %arg4: memref<128x128xbf16, #tpu.memory_space<vmem>>, %arg5: memref<1x128xf32, #tpu.memory_space<vmem>>, %arg6: memref<128x32xbf16, #tpu.memory_space<vmem>>, %arg7: memref<8x32xf32, #tpu.memory_space<vmem>>) attributes {dimension_semantics = [#tpu.dimension_semantics<parallel>], iteration_bounds = array<i64: 1>, scalar_prefetch = 0 : i64, scratch_operands = 0 : i64, tpu.core_type = #tpu.core_type<tc>, window_params = [{transform_indices = @transform_0, window_bounds = array<i64: 8, 32>}, {pipeline_mode = #tpu.pipeline_mode<synchronous>, transform_indices = @transform_1, window_bounds = array<i64: 32, 128>}, {pipeline_mode = #tpu.pipeline_mode<synchronous>, transform_indices = @transform_2, window_bounds = array<i64: 1, 128>}, {pipeline_mode = #tpu.pipeline_mode<synchronous>, transform_indices = @transform_3, window_bounds = array<i64: 128, 128>}, {pipeline_mode = #tpu.pipeline_mode<synchronous>, transform_indices = @transform_4, window_bounds = array<i64: 1, 128>}, {pipeline_mode = #tpu.pipeline_mode<synchronous>, transform_indices = @transform_5, window_bounds = array<i64: 128, 32>}, {transform_indices = @transform_6, window_bounds = array<i64: 8, 32>}]} {
    %c0 = arith.constant 0 : index
    %c0_0 = arith.constant 0 : index
    %0 = vector.load %arg1[%c0, %c0_0] : memref<8x32xf32, #tpu.memory_space<vmem>>, vector<8x32xf32>
    %1 = arith.truncf %0 : vector<8x32xf32> to vector<8x32xbf16>
    %c0_1 = arith.constant 0 : index
    %c0_2 = arith.constant 0 : index
    %2 = vector.load %arg2[%c0_1, %c0_2] : memref<32x128xbf16, #tpu.memory_space<vmem>>, vector<32x128xbf16>
    %cst = arith.constant dense<0.000000e+00> : vector<8x128xf32>
    %3 = tpu.matmul %1, %2, %cst {dimension_numbers = #tpu.dot_dimension_numbers<[1], [0], [0], [1], [0, 0, 1, 1], [], []>} : vector<8x32xbf16>, vector<32x128xbf16>, vector<8x128xf32> -> vector<8x128xf32>
    %c0_3 = arith.constant 0 : index
    %c0_4 = arith.constant 0 : index
    %4 = vector.load %arg3[%c0_3, %c0_4] : memref<1x128xf32, #tpu.memory_space<vmem>>, vector<1x128xf32>
    %5 = vector.broadcast %4 : vector<1x128xf32> to vector<8x128xf32>
    %6 = arith.addf %3, %5 : vector<8x128xf32>
    %7 = math.tanh %6 : vector<8x128xf32>
    %8 = arith.truncf %7 : vector<8x128xf32> to vector<8x128xbf16>
    %c0_5 = arith.constant 0 : index
    %c0_6 = arith.constant 0 : index
    %9 = vector.load %arg4[%c0_5, %c0_6] : memref<128x128xbf16, #tpu.memory_space<vmem>>, vector<128x128xbf16>
    %cst_7 = arith.constant dense<0.000000e+00> : vector<8x128xf32>
    %10 = tpu.matmul %8, %9, %cst_7 {dimension_numbers = #tpu.dot_dimension_numbers<[1], [0], [0], [1], [0, 0, 1, 1], [], []>} : vector<8x128xbf16>, vector<128x128xbf16>, vector<8x128xf32> -> vector<8x128xf32>
    %c0_8 = arith.constant 0 : index
    %c0_9 = arith.constant 0 : index
    %11 = vector.load %arg5[%c0_8, %c0_9] : memref<1x128xf32, #tpu.memory_space<vmem>>, vector<1x128xf32>
    %12 = vector.broadcast %11 : vector<1x128xf32> to vector<8x128xf32>
    %13 = arith.addf %10, %12 : vector<8x128xf32>
    %14 = math.tanh %13 : vector<8x128xf32>
    %15 = arith.truncf %14 : vector<8x128xf32> to vector<8x128xbf16>
    %c0_10 = arith.constant 0 : index
    %c0_11 = arith.constant 0 : index
    %16 = vector.load %arg6[%c0_10, %c0_11] : memref<128x32xbf16, #tpu.memory_space<vmem>>, vector<128x32xbf16>
    %cst_12 = arith.constant dense<0.000000e+00> : vector<8x32xf32>
    %17 = tpu.matmul %15, %16, %cst_12 {dimension_numbers = #tpu.dot_dimension_numbers<[1], [0], [0], [1], [0, 0, 1, 1], [], []>} : vector<8x128xbf16>, vector<128x32xbf16>, vector<8x32xf32> -> vector<8x32xf32>
    %c0_13 = arith.constant 0 : index
    %c0_14 = arith.constant 0 : index
    %18 = vector.load %arg7[%c0_13, %c0_14] : memref<8x32xf32, #tpu.memory_space<vmem>>, vector<8x32xf32>
    tpu.vector_store %arg7[%c0_13, %c0_14], %17 {strides = array<i32>} : memref<8x32xf32, #tpu.memory_space<vmem>>, vector<8x32xf32>,
    return
  }
  func.func @transform_0(%arg0: i32) -> (i32, i32) {
    %c0_i32 = arith.constant 0 : i32
    %c0_i32_0 = arith.constant 0 : i32
    return %arg0, %c0_i32 : i32, i32
  }
  func.func @transform_1(%arg0: i32) -> (i32, i32) {
    %c0_i32 = arith.constant 0 : i32
    %c0_i32_0 = arith.constant 0 : i32
    %c0_i32_1 = arith.constant 0 : i32
    return %c0_i32, %c0_i32_0 : i32, i32
  }
  func.func @transform_2(%arg0: i32) -> (i32, i32) {
    %c0_i32 = arith.constant 0 : i32
    %c0_i32_0 = arith.constant 0 : i32
    %c0_i32_1 = arith.constant 0 : i32
    return %c0_i32, %c0_i32_0 : i32, i32
  }
  func.func @transform_3(%arg0: i32) -> (i32, i32) {
    %c0_i32 = arith.constant 0 : i32
    %c0_i32_0 = arith.constant 0 : i32
    %c0_i32_1 = arith.constant 0 : i32
    return %c0_i32, %c0_i32_0 : i32, i32
  }
  func.func @transform_4(%arg0: i32) -> (i32, i32) {
    %c0_i32 = arith.constant 0 : i32
    %c0_i32_0 = arith.constant 0 : i32
    %c0_i32_1 = arith.constant 0 : i32
    return %c0_i32, %c0_i32_0 : i32, i32
  }
  func.func @transform_5(%arg0: i32) -> (i32, i32) {
    %c0_i32 = arith.constant 0 : i32
    %c0_i32_0 = arith.constant 0 : i32
    %c0_i32_1 = arith.constant 0 : i32
    return %c0_i32, %c0_i32_0 : i32, i32
  }
  func.func @transform_6(%arg0: i32) -> (i32, i32) {
    %c0_i32 = arith.constant 0 : i32
    %c0_i32_0 = arith.constant 0 : i32
    return %arg0, %c0_i32 : i32, i32
  }
}

</mosaic_0001>

<llo_original>
// kernel: tpu_custom_call.1
$region0: #{tpu_custom_call.1}
  #allocation0 [shape = 'u32[]', space=smem, size = 0x4, offset = 0x4, fixed_abs, tag = 'smem constant byte address 0x4 - core index']
  #allocation1 [shape = 'u32[144,128]{1,0:T(1,128)}', space=vmem, size = 0x12000, scoped, tag = 'internal scratch']
  %s0 = inlined_call_operand.hbm [shape: f32[8,32], index: 0, kind: input, shape index: {}]
  %s1 = inlined_call_operand.vmem [shape: bf16[32,128], index: 1, kind: input, shape index: {}]
  %s2 = inlined_call_operand.vmem [shape: f32[1,128], index: 2, kind: input, shape index: {}]
  %s3 = inlined_call_operand.vmem [shape: bf16[128,128], index: 3, kind: input, shape index: {}]
  %s4 = inlined_call_operand.vmem [shape: f32[1,128], index: 4, kind: input, shape index: {}]
  %s5 = inlined_call_operand.vmem [shape: bf16[128,32], index: 5, kind: input, shape index: {}]
  %s6 = inlined_call_operand.hbm [shape: f32[8,32], index: 6, kind: output, shape index: {}]
  %s7 = sld [smem:[#allocation0]]
  $region38: #{tpu_custom_call.1} parent=0
    _
  %s9 = ssub.s32 1, %s7
  %s10 = scalar_select 0, %s9, %s7
  $region1: #{tpu_custom_call.1} parent=0
    #allocation2 [shape = 'u8[4096]{0}', space=vmem, size = 0x1000, scoped, tag = 'input window, operand 0, single buffered']
    #allocation3 [shape = 's32[1]{0}', space=sflag, size = 0x4, scoped, tag = 'scoped memory for tpu_custom_call.1']
    #allocation4 [shape = 's32[1]{0}', space=sflag, size = 0x4, scoped, tag = 'scoped memory for tpu_custom_call.1']
    #allocation5 [shape = 'u8[4096]{0}', space=vmem, size = 0x1000, scoped, tag = 'output window, operand 0, single buffered']
    %11 = vsyncpa [#allocation3], 0
    %12 = vsyncpa [#allocation4], 0
    // Predicated region
    $region2: #{tpu_custom_call.1} parent=1 // pred_check
      _
    $region3: #{tpu_custom_call.1} parent=1 // pred_check_branch
      %14 = sbr.rel (0) target = $region5
    $region4: #{tpu_custom_call.1} parent=1 // pred_region
      %s16 = ssub.s32 128, 128
      %17 = vsyncadd [#allocation3], %s16
      %s19 = sshll.u32 [#allocation2], 4
      %s20 = int_to_ptr.vmem [resolvable:$true] %s19
      %22 = dma.hbm_to_vmem [thread:$0]  %s0, 128, %s20, [#allocation3]
    $region5: #{tpu_custom_call.1} parent=1 // pred_fallthru
      _
    // Predicated region
    $region6: #{tpu_custom_call.1} parent=1 // pred_check
      _
    $region7: #{tpu_custom_call.1} parent=1 // pred_check_branch
      %24 = sbr.rel (0) target = $region9
    $region8: #{tpu_custom_call.1} parent=1 // pred_region
      _
    $region9: #{tpu_custom_call.1} parent=1 // pred_fallthru
      _
    // Predicated region
    $region10: #{tpu_custom_call.1} parent=1 // pred_check
      _
    $region11: #{tpu_custom_call.1} parent=1 // pred_check_branch
      %26 = sbr.rel (0) target = $region13
    $region12: #{tpu_custom_call.1} parent=1 // pred_region
      _
    $region13: #{tpu_custom_call.1} parent=1 // pred_fallthru
      _
    // Predicated region
    $region14: #{tpu_custom_call.1} parent=1 // pred_check
      _
    $region15: #{tpu_custom_call.1} parent=1 // pred_check_branch
      %28 = sbr.rel (0) target = $region17
    $region16: #{tpu_custom_call.1} parent=1 // pred_region
      _
    $region17: #{tpu_custom_call.1} parent=1 // pred_fallthru
      _
    // Predicated region
    $region18: #{tpu_custom_call.1} parent=1 // pred_check
      _
    $region19: #{tpu_custom_call.1} parent=1 // pred_check_branch
      %30 = sbr.rel (0) target = $region21
    $region20: #{tpu_custom_call.1} parent=1 // pred_region
      _
    $region21: #{tpu_custom_call.1} parent=1 // pred_fallthru
      _
    // Predicated region
    $region22: #{tpu_custom_call.1} parent=1 // pred_check
      _
    $region23: #{tpu_custom_call.1} parent=1 // pred_check_branch
      %32 = sbr.rel (0) target = $region25
    $region24: #{tpu_custom_call.1} parent=1 // pred_region
      _
    $region25: #{tpu_custom_call.1} parent=1 // pred_fallthru
      _
    // Predicated region
    $region26: #{tpu_custom_call.1} parent=1 // pred_check
      _
    $region27: #{tpu_custom_call.1} parent=1 // pred_check_branch
      %34 = sbr.rel (0) target = $region29
    $region28: #{tpu_custom_call.1} parent=1 // pred_region
      %35 = dma.done [#allocation3], 128
    $region29: #{tpu_custom_call.1} parent=1 // pred_fallthru
      _
    %v37 = vld [vmem:[#allocation2] sm:$0xff]
    %v38 = vpack.c.bf16 %v37, %v37
    %v39 = vld [vmem:[%s1] sm:$0xf]
    %v40 = vld [vmem:[%s1 + $0x4] sm:$0xf]
    %v41 = vld [vmem:[%s1 + $0x8] sm:$0xf]
    %v42 = vld [vmem:[%s1 + $0xc] sm:$0xf]
    %v43 = vld [vmem:[%s2] sm:$0x1]
    %v45 = vlaneseq
    %v46 = vshrl.u32 %v45, 7
    %v47 = vsub.s32 0, %v46
    %v48 = vrot.slane %v43, %v47
    %v54 = vunpack.c.l.b16 %v39
    %v55 = vunpack.c.l.b16 %v40
    %v56 = vunpack.c.l.b16 %v41
    %v57 = vunpack.c.l.b16 %v42
    %v58 = vpack.c.b16 %v55, %v54
    %v59 = vpack.c.b16 %v57, %v56
    %vm62 = vcmask 261120
    %v64 = vsel %vm62, %v38, 0
    %66 = vmatprep.subr.bf16.mxu0 0
    %67 = vmatpush1.bf16.msra.mxu0 0
    %68 = vmatprep.subr.bf16.mxu0 0
    %69 = vmatpush1.bf16.msra.mxu0 0
    %70 = vmatprep.subr.bf16.mxu0 0
    %71 = vmatpush1.bf16.msra.mxu0 0
    %72 = vmatprep.subr.bf16.mxu0 0
    %73 = vmatpush1.bf16.msra.mxu0 0
    %74 = vmatprep.subr.bf16.mxu0 0
    %75 = vmatpush1.bf16.msra.mxu0 0
    %76 = vmatprep.subr.bf16.mxu0 0
    %77 = vmatpush1.bf16.msra.mxu0 0
    %78 = vmatprep.subr.bf16.mxu0 0
    %79 = vmatpush1.bf16.msra.mxu0 %v59
    %80 = vmatprep.subr.bf16.mxu0 0
    %81 = vmatpush1.bf16.msra.mxu0 %v58
    %82 = vmatprep.subr.bf16.mxu0 0
    %83 = vmatpush2.bf16.msra.mxu0 0
    %84 = vmatprep.subr.bf16.mxu0 0
    %85 = vmatpush2.bf16.msra.mxu0 0
    %86 = vmatprep.subr.bf16.mxu0 0
    %87 = vmatpush2.bf16.msra.mxu0 0
    %88 = vmatprep.subr.bf16.mxu0 0
    %89 = vmatpush2.bf16.msra.mxu0 0
    %90 = vmatprep.subr.bf16.mxu0 0
    %91 = vmatpush2.bf16.msra.mxu0 0
    %92 = vmatprep.subr.bf16.mxu0 0
    %93 = vmatpush2.bf16.msra.mxu0 0
    %94 = vmatprep.subr.bf16.mxu0 0
    %95 = vmatpush2.bf16.msra.mxu0 0
    %96 = vmatprep.subr.bf16.mxu0 0
    %97 = vmatpush2.bf16.msra.mxu0 0
    %98 = vmatprep.mubr.bf16.mxu0 0
    %99 = vmatmul.mubr.bf16.gmra.mxu0 %v64
    %v100 = vpop.f32.mrf.mxu0
    %v101 = vadd.f32 %v48, %v100
    %v102 = vpop.f32.mrf.mxu0
    %v103 = vpop.f32.mrf.mxu0
    %v104 = vpop.f32.mrf.mxu0
    %105 = vdwg.mxu0
    %v106 = vtanh.pop %v101
    %v107 = vpack.c.bf16 %v106, %v106
    %v108 = vld [vmem:[%s3] sm:$0xf]
    %v109 = vld [vmem:[%s3 + $0x4] sm:$0xf]
    %v110 = vld [vmem:[%s3 + $0x8] sm:$0xf]
    %v111 = vld [vmem:[%s3 + $0xc] sm:$0xf]
    %v112 = vld [vmem:[%s3 + $0x10] sm:$0xf]
    %v113 = vld [vmem:[%s3 + $0x14] sm:$0xf]
    %v114 = vld [vmem:[%s3 + $0x18] sm:$0xf]
    %v115 = vld [vmem:[%s3 + $0x1c] sm:$0xf]
    %v116 = vld [vmem:[%s3 + $0x20] sm:$0xf]
    %v117 = vld [vmem:[%s3 + $0x24] sm:$0xf]
    %v118 = vld [vmem:[%s3 + $0x28] sm:$0xf]
    %v119 = vld [vmem:[%s3 + $0x2c] sm:$0xf]
    %v120 = vld [vmem:[%s3 + $0x30] sm:$0xf]
    %v121 = vld [vmem:[%s3 + $0x34] sm:$0xf]
    %v122 = vld [vmem:[%s3 + $0x38] sm:$0xf]
    %v123 = vld [vmem:[%s3 + $0x3c] sm:$0xf]
    %v124 = vld [vmem:[%s4] sm:$0x1]
    %v126 = vlaneseq
    %v127 = vshrl.u32 %v126, 7
    %v128 = vsub.s32 0, %v127
    %v129 = vrot.slane %v124, %v128
    %v147 = vunpack.c.l.b16 %v108
    %v148 = vunpack.c.l.b16 %v109
    %v149 = vunpack.c.l.b16 %v110
    %v150 = vunpack.c.l.b16 %v111
    %v151 = vunpack.c.l.b16 %v112
    %v152 = vunpack.c.l.b16 %v113
    %v153 = vunpack.c.l.b16 %v114
    %v154 = vunpack.c.l.b16 %v115
    %v155 = vunpack.c.l.b16 %v116
    %v156 = vunpack.c.l.b16 %v117
    %v157 = vunpack.c.l.b16 %v118
    %v158 = vunpack.c.l.b16 %v119
    %v159 = vunpack.c.l.b16 %v120
    %v160 = vunpack.c.l.b16 %v121
    %v161 = vunpack.c.l.b16 %v122
    %v162 = vunpack.c.l.b16 %v123
    %v163 = vpack.c.b16 %v148, %v147
    %v164 = vpack.c.b16 %v150, %v149
    %v165 = vpack.c.b16 %v152, %v151
    %v166 = vpack.c.b16 %v154, %v153
    %v167 = vpack.c.b16 %v156, %v155
    %v168 = vpack.c.b16 %v158, %v157
    %v169 = vpack.c.b16 %v160, %v159
    %v170 = vpack.c.b16 %v162, %v161
    %179 = vmatprep.subr.bf16.mxu0 0
    %180 = vmatpush1.bf16.msra.mxu0 %v170
    %181 = vmatprep.subr.bf16.mxu0 0
    %182 = vmatpush1.bf16.msra.mxu0 %v169
    %183 = vmatprep.subr.bf16.mxu0 0
    %184 = vmatpush1.bf16.msra.mxu0 %v168
    %185 = vmatprep.subr.bf16.mxu0 0
    %186 = vmatpush1.bf16.msra.mxu0 %v167
    %187 = vmatprep.subr.bf16.mxu0 0
    %188 = vmatpush1.bf16.msra.mxu0 %v166
    %189 = vmatprep.subr.bf16.mxu0 0
    %190 = vmatpush1.bf16.msra.mxu0 %v165
    %191 = vmatprep.subr.bf16.mxu0 0
    %192 = vmatpush1.bf16.msra.mxu0 %v164
    %193 = vmatprep.subr.bf16.mxu0 0
    %194 = vmatpush1.bf16.msra.mxu0 %v163
    %195 = vmatprep.subr.bf16.mxu0 0
    %196 = vmatpush2.bf16.msra.mxu0 0
    %197 = vmatprep.subr.bf16.mxu0 0
    %198 = vmatpush2.bf16.msra.mxu0 0
    %199 = vmatprep.subr.bf16.mxu0 0
    %200 = vmatpush2.bf16.msra.mxu0 0
    %201 = vmatprep.subr.bf16.mxu0 0
    %202 = vmatpush2.bf16.msra.mxu0 0
    %203 = vmatprep.subr.bf16.mxu0 0
    %204 = vmatpush2.bf16.msra.mxu0 0
    %205 = vmatprep.subr.bf16.mxu0 0
    %206 = vmatpush2.bf16.msra.mxu0 0
    %207 = vmatprep.subr.bf16.mxu0 0
    %208 = vmatpush2.bf16.msra.mxu0 0
    %209 = vmatprep.subr.bf16.mxu0 0
    %210 = vmatpush2.bf16.msra.mxu0 0
    %211 = vmatprep.mubr.bf16.mxu0 0
    %212 = vmatmul.mubr.bf16.gmra.mxu0 %v107
    %v213 = vpop.f32.mrf.mxu0
    %v214 = vadd.f32 %v129, %v213
    %v215 = vpop.f32.mrf.mxu0
    %v216 = vpop.f32.mrf.mxu0
    %v217 = vpop.f32.mrf.mxu0
    %218 = vdwg.mxu0
    %v219 = vtanh.pop %v214
    %v220 = vpack.c.bf16 %v219, %v219
    %v221 = vld [vmem:[%s5] sm:$0xf]
    %v222 = vld [vmem:[%s5 + $0x4] sm:$0xf]
    %v223 = vld [vmem:[%s5 + $0x8] sm:$0xf]
    %v224 = vld [vmem:[%s5 + $0xc] sm:$0xf]
    %v225 = vld [vmem:[%s5 + $0x10] sm:$0xf]
    %v226 = vld [vmem:[%s5 + $0x14] sm:$0xf]
    %v227 = vld [vmem:[%s5 + $0x18] sm:$0xf]
    %v228 = vld [vmem:[%s5 + $0x1c] sm:$0xf]
    %v229 = vld [vmem:[%s5 + $0x20] sm:$0xf]
    %v230 = vld [vmem:[%s5 + $0x24] sm:$0xf]
    %v231 = vld [vmem:[%s5 + $0x28] sm:$0xf]
    %v232 = vld [vmem:[%s5 + $0x2c] sm:$0xf]
    %v233 = vld [vmem:[%s5 + $0x30] sm:$0xf]
    %v234 = vld [vmem:[%s5 + $0x34] sm:$0xf]
    %v235 = vld [vmem:[%s5 + $0x38] sm:$0xf]
    %v236 = vld [vmem:[%s5 + $0x3c] sm:$0xf]
    %v253 = vunpack.c.l.b16 %v221
    %v254 = vunpack.c.l.b16 %v222
    %v255 = vunpack.c.l.b16 %v223
    %v256 = vunpack.c.l.b16 %v224
    %v257 = vunpack.c.l.b16 %v225
    %v258 = vunpack.c.l.b16 %v226
    %v259 = vunpack.c.l.b16 %v227
    %v260 = vunpack.c.l.b16 %v228
    %v261 = vunpack.c.l.b16 %v229
    %v262 = vunpack.c.l.b16 %v230
    %v263 = vunpack.c.l.b16 %v231
    %v264 = vunpack.c.l.b16 %v232
    %v265 = vunpack.c.l.b16 %v233
    %v266 = vunpack.c.l.b16 %v234
    %v267 = vunpack.c.l.b16 %v235
    %v268 = vunpack.c.l.b16 %v236
    %v269 = vpack.c.b16 %v254, %v253
    %v270 = vpack.c.b16 %v256, %v255
    %v271 = vpack.c.b16 %v258, %v257
    %v272 = vpack.c.b16 %v260, %v259
    %v273 = vpack.c.b16 %v262, %v261
    %v274 = vpack.c.b16 %v264, %v263
    %v275 = vpack.c.b16 %v266, %v265
    %v276 = vpack.c.b16 %v268, %v267
    %285 = vmatprep.subr.bf16.mxu0 0
    %286 = vmatpush1.bf16.msra.mxu0 %v276
    %287 = vmatprep.subr.bf16.mxu0 0
    %288 = vmatpush1.bf16.msra.mxu0 %v275
    %289 = vmatprep.subr.bf16.mxu0 0
    %290 = vmatpush1.bf16.msra.mxu0 %v274
    %291 = vmatprep.subr.bf16.mxu0 0
    %292 = vmatpush1.bf16.msra.mxu0 %v273
    %293 = vmatprep.subr.bf16.mxu0 0
    %294 = vmatpush1.bf16.msra.mxu0 %v272
    %295 = vmatprep.subr.bf16.mxu0 0
    %296 = vmatpush1.bf16.msra.mxu0 %v271
    %297 = vmatprep.subr.bf16.mxu0 0
    %298 = vmatpush1.bf16.msra.mxu0 %v270
    %299 = vmatprep.subr.bf16.mxu0 0
    %300 = vmatpush1.bf16.msra.mxu0 %v269
    %301 = vmatprep.subr.bf16.mxu0 0
    %302 = vmatpush2.bf16.msra.mxu0 0
    %303 = vmatprep.subr.bf16.mxu0 0
    %304 = vmatpush2.bf16.msra.mxu0 0
    %305 = vmatprep.subr.bf16.mxu0 0
    %306 = vmatpush2.bf16.msra.mxu0 0
    %307 = vmatprep.subr.bf16.mxu0 0
    %308 = vmatpush2.bf16.msra.mxu0 0
    %309 = vmatprep.subr.bf16.mxu0 0
    %310 = vmatpush2.bf16.msra.mxu0 0
    %311 = vmatprep.subr.bf16.mxu0 0
    %312 = vmatpush2.bf16.msra.mxu0 0
    %313 = vmatprep.subr.bf16.mxu0 0
    %314 = vmatpush2.bf16.msra.mxu0 0
    %315 = vmatprep.subr.bf16.mxu0 0
    %316 = vmatpush2.bf16.msra.mxu0 0
    %317 = vmatprep.mubr.bf16.mxu0 0
    %318 = vmatmul.mubr.bf16.gmra.mxu0 %v220
    %v319 = vpop.f32.mrf.mxu0
    %v320 = vadd.f32 0.0, %v319
    %v321 = vpop.f32.mrf.mxu0
    %v322 = vpop.f32.mrf.mxu0
    %v323 = vpop.f32.mrf.mxu0
    %324 = vdwg.mxu0
    %325 = vst.msk [vmem:[#allocation5] sm:$0xff] %vm62, %v320
    // Predicated region
    $region30: #{tpu_custom_call.1} parent=1 // pred_check
      _
    $region31: #{tpu_custom_call.1} parent=1 // pred_check_branch
      %327 = sbr.rel (0) target = $region33
    $region32: #{tpu_custom_call.1} parent=1 // pred_region
      %s329 = ssub.s32 128, 128
      %330 = vsyncadd [#allocation4], %s329
      %s332 = sshll.u32 [#allocation5], 4
      %s333 = int_to_ptr.vmem [resolvable:$true] %s332
      %335 = dma.vmem_to_hbm [thread:$0]  %s333, 128, %s6, [#allocation4]
    $region33: #{tpu_custom_call.1} parent=1 // pred_fallthru
      _
    // Predicated region
    $region34: #{tpu_custom_call.1} parent=1 // pred_check
      _
    $region35: #{tpu_custom_call.1} parent=1 // pred_check_branch
      %337 = sbr.rel (0) target = $region37
    $region36: #{tpu_custom_call.1} parent=1 // pred_region
      %338 = dma.done [#allocation4], 128
    $region37: #{tpu_custom_call.1} parent=1 // pred_fallthru
      _
    %339 = vsyncpa [#allocation3], 1
    %340 = vsyncpa [#allocation4], 1

</llo_original>
